<compile_context>
chip_gen: v7x
topology: tpu7x:2x2x1
jax: 0.10.0
libtpu: 0.0.40
codegen_flags: <defaults>
</compile_context>

<pallas_src>
import jax
import jax.numpy as jnp
from jax.experimental import pallas as pl
from jax.experimental.pallas import tpu as pltpu


def _fused_matvec_kernel(x1_ref, x2_ref, x3_ref, x4_ref, v_ref, c_ref, o_ref):
    # v_ref is (4, 4): row 0 = W1^T v1, row 1 = v2, row 2 = W2^T v3, row 3 = v3.
    # Accumulate the four weighted inputs on the VPU, then one lane reduce
    # (XLU) and add the folded-bias scalar from SMEM.  The MXU is never used
    # for these degenerate shapes.
    acc = (x1_ref[...] * v_ref[0:1, :]
           + x2_ref[...] * v_ref[1:2, :]
           + x3_ref[...] * v_ref[2:3, :]
           + x4_ref[...] * v_ref[3:4, :])
    o_ref[...] = jnp.sum(acc, axis=-1, keepdims=True) + c_ref[0, 0]


def model_forward(x1, x2, x3, x4, w1, b1, w2, b2):
    """x*: (rows, 4); w*: (4, 4) PyTorch layout (out, in); b*: (4,)."""
    v1 = jnp.array([1.0, 2.0, 3.0, 4.0], dtype=jnp.float32)
    v2 = jnp.array([2.0, 3.0, 1.0, 4.0], dtype=jnp.float32)
    v3 = jnp.array([2.0, 3.0, 4.0, 1.0], dtype=jnp.float32)

    # Fold the linear layers into the constant vectors (exact in f32, done once
    # on parameters only):  (x @ W^T + b) @ v = x @ (W^T v) + (b . v)
    u1 = w1.T @ v1                                  # (4,)
    u3 = w2.T @ v3                                  # (4,)
    c = jnp.dot(b1, v1) + jnp.dot(b2, v3)           # scalar (folded biases)

    vstack = jnp.stack([u1, v2, u3, v3], axis=0).astype(jnp.float32)   # (4, 4)
    c_smem = c.reshape(1, 1).astype(jnp.float32)                       # (1, 1)

    rows = x1.shape[0]
    return pl.pallas_call(
        _fused_matvec_kernel,
        out_shape=jax.ShapeDtypeStruct((rows, 1), jnp.float32),
        in_specs=[
            pl.BlockSpec(memory_space=pltpu.MemorySpace.VMEM),   # x1
            pl.BlockSpec(memory_space=pltpu.MemorySpace.VMEM),   # x2
            pl.BlockSpec(memory_space=pltpu.MemorySpace.VMEM),   # x3
            pl.BlockSpec(memory_space=pltpu.MemorySpace.VMEM),   # x4
            pl.BlockSpec(memory_space=pltpu.MemorySpace.VMEM),   # vstack
            pl.BlockSpec(memory_space=pltpu.MemorySpace.SMEM),   # folded bias
        ],
        out_specs=pl.BlockSpec(memory_space=pltpu.MemorySpace.VMEM),
    )(x1, x2, x3, x4, vstack, c_smem)


if __name__ == "__main__":
    key = jax.random.PRNGKey(0)
    k1, k2, k3, k4, kw1, kb1, kw2, kb2 = jax.random.split(key, 8)

    # Inputs: (3, 4) like torch.rand(3, 4)
    x1 = jax.random.uniform(k1, (3, 4), dtype=jnp.float32)
    x2 = jax.random.uniform(k2, (3, 4), dtype=jnp.float32)
    x3 = jax.random.uniform(k3, (3, 4), dtype=jnp.float32)
    x4 = jax.random.uniform(k4, (3, 4), dtype=jnp.float32)

    # Deterministic Linear parameters (PyTorch layout: weight (out, in), bias (out,))
    bound = 1.0 / jnp.sqrt(4.0)
    w1 = jax.random.uniform(kw1, (4, 4), jnp.float32, -bound, bound)
    b1 = jax.random.uniform(kb1, (4,), jnp.float32, -bound, bound)
    w2 = jax.random.uniform(kw2, (4, 4), jnp.float32, -bound, bound)
    b2 = jax.random.uniform(kb2, (4,), jnp.float32, -bound, bound)
    # lin3 is defined in the module but never used in forward — omitted.

    out = jax.jit(model_forward)(x1, x2, x3, x4, w1, b1, w2, b2)
    jax.block_until_ready(out)

    # Pure-JAX reference check (un-folded form, matches torch intent).
    v1c = jnp.array([[1.0], [2.0], [3.0], [4.0]], dtype=jnp.float32)
    v2c = jnp.array([[2.0], [3.0], [1.0], [4.0]], dtype=jnp.float32)
    v3c = jnp.array([[2.0], [3.0], [4.0], [1.0]], dtype=jnp.float32)
    ref = ((x1 @ w1.T + b1) @ v1c
           + x2 @ v2c
           + (x3 @ w2.T + b2) @ v3c
           + x4 @ v3c)
    assert jnp.allclose(out, ref, atol=1e-5), (out, ref)

    print("KERNEL_OK")
</pallas_src>

<mosaic_0001>
module attributes {stable_mosaic.version = 11 : i64} {
  func.func @_fused_matvec_kernel(%arg0: memref<3x4xf32, #tpu.memory_space<vmem>>, %arg1: memref<3x4xf32, #tpu.memory_space<vmem>>, %arg2: memref<3x4xf32, #tpu.memory_space<vmem>>, %arg3: memref<3x4xf32, #tpu.memory_space<vmem>>, %arg4: memref<4x4xf32, #tpu.memory_space<vmem>>, %arg5: memref<1x1xf32, #tpu.memory_space<smem>>, %arg6: memref<3x1xf32, #tpu.memory_space<vmem>>) attributes {dimension_semantics = [], scalar_prefetch = 0 : i64, scratch_operands = 0 : i64, tpu.core_type = #tpu.core_type<tc>} {
    %c0 = arith.constant 0 : index
    %c0_0 = arith.constant 0 : index
    %0 = vector.load %arg0[%c0, %c0_0] : memref<3x4xf32, #tpu.memory_space<vmem>>, vector<3x4xf32>
    %c0_1 = arith.constant 0 : index
    %c0_2 = arith.constant 0 : index
    %1 = vector.load %arg4[%c0_1, %c0_2] : memref<4x4xf32, #tpu.memory_space<vmem>>, vector<1x4xf32>
    %2 = vector.broadcast %1 : vector<1x4xf32> to vector<3x4xf32>
    %3 = arith.mulf %0, %2 : vector<3x4xf32>
    %c0_3 = arith.constant 0 : index
    %c0_4 = arith.constant 0 : index
    %4 = vector.load %arg1[%c0_3, %c0_4] : memref<3x4xf32, #tpu.memory_space<vmem>>, vector<3x4xf32>
    %c1 = arith.constant 1 : index
    %c0_5 = arith.constant 0 : index
    %5 = vector.load %arg4[%c1, %c0_5] : memref<4x4xf32, #tpu.memory_space<vmem>>, vector<1x4xf32>
    %6 = vector.broadcast %5 : vector<1x4xf32> to vector<3x4xf32>
    %7 = arith.mulf %4, %6 : vector<3x4xf32>
    %8 = arith.addf %3, %7 : vector<3x4xf32>
    %c0_6 = arith.constant 0 : index
    %c0_7 = arith.constant 0 : index
    %9 = vector.load %arg2[%c0_6, %c0_7] : memref<3x4xf32, #tpu.memory_space<vmem>>, vector<3x4xf32>
    %c2 = arith.constant 2 : index
    %c0_8 = arith.constant 0 : index
    %10 = vector.load %arg4[%c2, %c0_8] : memref<4x4xf32, #tpu.memory_space<vmem>>, vector<1x4xf32>
    %11 = vector.broadcast %10 : vector<1x4xf32> to vector<3x4xf32>
    %12 = arith.mulf %9, %11 : vector<3x4xf32>
    %13 = arith.addf %8, %12 : vector<3x4xf32>
    %c0_9 = arith.constant 0 : index
    %c0_10 = arith.constant 0 : index
    %14 = vector.load %arg3[%c0_9, %c0_10] : memref<3x4xf32, #tpu.memory_space<vmem>>, vector<3x4xf32>
    %c3 = arith.constant 3 : index
    %c0_11 = arith.constant 0 : index
    %15 = vector.load %arg4[%c3, %c0_11] : memref<4x4xf32, #tpu.memory_space<vmem>>, vector<1x4xf32>
    %16 = vector.broadcast %15 : vector<1x4xf32> to vector<3x4xf32>
    %17 = arith.mulf %14, %16 : vector<3x4xf32>
    %18 = arith.addf %13, %17 : vector<3x4xf32>
    %cst = arith.constant dense<0.000000e+00> : vector<3xf32>
    %19 = vector.multi_reduction <add>, %18, %cst [1] : vector<3x4xf32> to vector<3xf32>
    %20 = vector.shape_cast %19 : vector<3xf32> to vector<3x1xf32>
    %c0_12 = arith.constant 0 : index
    %c0_13 = arith.constant 0 : index
    %21 = memref.load %arg5[%c0_12, %c0_13] : memref<1x1xf32, #tpu.memory_space<smem>>
    %22 = vector.broadcast %21 : f32 to vector<3x1xf32>
    %23 = arith.addf %20, %22 : vector<3x1xf32>
    %c0_14 = arith.constant 0 : index
    %c0_15 = arith.constant 0 : index
    %24 = vector.load %arg6[%c0_14, %c0_15] : memref<3x1xf32, #tpu.memory_space<vmem>>, vector<3x1xf32>
    tpu.vector_store %arg6[%c0_14, %c0_15], %23 {strides = array<i32>} : memref<3x1xf32, #tpu.memory_space<vmem>>, vector<3x1xf32>,
    return
  }
}

</mosaic_0001>

<llo_original>
// kernel: model_forward.1
$region0: #{model_forward.1}
  #allocation0 [shape = 'u32[]', space=smem, size = 0x4, offset = 0x4, fixed_abs, tag = 'smem constant byte address 0x4 - core index']
  #allocation1 [shape = 'u32[144,128]{1,0:T(1,128)}', space=vmem, size = 0x12000, scoped, tag = 'internal scratch']
  #allocation2 [shape = 'f32[1,1]{1,0:T(1,128)S(6)}', space=smem, size = 0x200, scoped, tag = 'scoped memory for model_forward.1']
  %s0 = inlined_call_operand.vmem [shape: f32[3,4], index: 0, kind: input, shape index: {}]
  %s1 = inlined_call_operand.vmem [shape: f32[3,4], index: 1, kind: input, shape index: {}]
  %s2 = inlined_call_operand.vmem [shape: f32[3,4], index: 2, kind: input, shape index: {}]
  %s3 = inlined_call_operand.vmem [shape: f32[3,4], index: 3, kind: input, shape index: {}]
  %s4 = inlined_call_operand.vmem [shape: f32[4,4], index: 4, kind: input, shape index: {}]
  %s5 = inlined_call_operand.<no memory space> [shape: f32[1,1], index: 5, kind: input, shape index: {}]
  %s6 = inlined_call_operand.vmem [shape: f32[3,1], index: 6, kind: output, shape index: {}]
  %s7 = sld [smem:[#allocation0]]
  $region34: #{model_forward.1} parent=0
    _
  %s9 = ssub.s32 1, %s7
  %s10 = scalar_select 0, %s9, %s7
  %11 = sst [smem:[#allocation2]] %s5
  // Predicated region
  $region2: #{model_forward.1} parent=0 // pred_check
    _
  $region3: #{model_forward.1} parent=0 // pred_check_branch
    %13 = sbr.rel (0) target = $region5
  $region4: #{model_forward.1} parent=0 // pred_region
    _
  $region5: #{model_forward.1} parent=0 // pred_fallthru
    _
  // Predicated region
  $region6: #{model_forward.1} parent=0 // pred_check
    _
  $region7: #{model_forward.1} parent=0 // pred_check_branch
    %15 = sbr.rel (0) target = $region9
  $region8: #{model_forward.1} parent=0 // pred_region
    _
  $region9: #{model_forward.1} parent=0 // pred_fallthru
    _
  // Predicated region
  $region10: #{model_forward.1} parent=0 // pred_check
    _
  $region11: #{model_forward.1} parent=0 // pred_check_branch
    %17 = sbr.rel (0) target = $region13
  $region12: #{model_forward.1} parent=0 // pred_region
    _
  $region13: #{model_forward.1} parent=0 // pred_fallthru
    _
  // Predicated region
  $region14: #{model_forward.1} parent=0 // pred_check
    _
  $region15: #{model_forward.1} parent=0 // pred_check_branch
    %19 = sbr.rel (0) target = $region17
  $region16: #{model_forward.1} parent=0 // pred_region
    _
  $region17: #{model_forward.1} parent=0 // pred_fallthru
    _
  // Predicated region
  $region18: #{model_forward.1} parent=0 // pred_check
    _
  $region19: #{model_forward.1} parent=0 // pred_check_branch
    %21 = sbr.rel (0) target = $region21
  $region20: #{model_forward.1} parent=0 // pred_region
    _
  $region21: #{model_forward.1} parent=0 // pred_fallthru
    _
  // Predicated region
  $region22: #{model_forward.1} parent=0 // pred_check
    _
  $region23: #{model_forward.1} parent=0 // pred_check_branch
    %23 = sbr.rel (0) target = $region25
  $region24: #{model_forward.1} parent=0 // pred_region
    _
  $region25: #{model_forward.1} parent=0 // pred_fallthru
    _
  %v24 = vld [vmem:[%s0] sm:$0x7]
  %v25 = vld [vmem:[%s4] sm:$0x1]
  %v26 = vlaneseq
  %v27 = vshrl.u32 %v26, 7
  %v28 = vsub.s32 0, %v27
  %v29 = vrot.slane %v25, %v28
  %v30 = vmul.f32 %v24, %v29
  %v31 = vld [vmem:[%s1] sm:$0x7]
  %v32 = vld [vmem:[%s4 + $0x1] sm:$0x1]
  %v33 = vlaneseq
  %v34 = vshrl.u32 %v33, 7
  %v35 = vsub.s32 0, %v34
  %v36 = vrot.slane %v32, %v35
  %v37 = vmul.f32 %v31, %v36
  %v38 = vadd.f32 %v30, %v37
  %v39 = vld [vmem:[%s2] sm:$0x7]
  %v40 = vld [vmem:[%s4 + $0x2] sm:$0x1]
  %v41 = vlaneseq
  %v42 = vshrl.u32 %v41, 7
  %v43 = vsub.s32 0, %v42
  %v44 = vrot.slane %v40, %v43
  %v45 = vmul.f32 %v39, %v44
  %v46 = vadd.f32 %v38, %v45
  %v47 = vld [vmem:[%s3] sm:$0x7]
  %v48 = vld [vmem:[%s4 + $0x3] sm:$0x1]
  %v49 = vlaneseq
  %v50 = vshrl.u32 %v49, 7
  %v51 = vsub.s32 0, %v50
  %v52 = vrot.slane %v48, %v51
  %v53 = vmul.f32 %v47, %v52
  %v54 = vadd.f32 %v46, %v53
  %vm55 = vcmask 26624
  %v56 = vsel %vm55, %v54, 0.0
  %57 = vadd.xlane.f32.xlu0 %v56
  %v58 = vpop.xlane.xlu0 %57
  %s59 = sld [smem:[#allocation2]]
  %v60 = vstv %s59
  %v61 = vadd.f32 %v58, %v60
  %vm62 = vcmask 2048
  %63 = vst.msk [vmem:[%s6] sm:$0x7] %vm62, %v61
  // Predicated region
  $region26: #{model_forward.1} parent=0 // pred_check
    _
  $region27: #{model_forward.1} parent=0 // pred_check_branch
    %65 = sbr.rel (0) target = $region29
  $region28: #{model_forward.1} parent=0 // pred_region
    _
  $region29: #{model_forward.1} parent=0 // pred_fallthru
    _
  // Predicated region
  $region30: #{model_forward.1} parent=0 // pred_check
    _
  $region31: #{model_forward.1} parent=0 // pred_check_branch
    %67 = sbr.rel (0) target = $region33
  $region32: #{model_forward.1} parent=0 // pred_region
    _
  $region33: #{model_forward.1} parent=0 // pred_fallthru
    _

</llo_original>
